<compile_context>
chip_gen: v6e
topology: v6e:2x2x1
jax: 0.10.0
libtpu: 0.0.40
codegen_flags: <defaults>
</compile_context>

<pallas_src>
import jax
import jax.numpy as jnp
from jax import lax
from jax.experimental import pallas as pl
from jax.experimental.pallas import tpu as pltpu

MIDDLE_OPS = ("gcn", "gin", "skip", "residual")
NUM_OPS = len(MIDDLE_OPS)
BN_EPS = 1e-5


def _cell_middle_kernel(adj_ref, hstk_ref, hint_ref, pgcn_ref, pgin_ref,
                        vec_ref, out_ref):
    """All cell nodes in one step.

    adj_ref : (N, N)        bf16   normalized adjacency
    hstk_ref: (N, nodes*F)  f32    lane-stacked states [h_0|h_1|h_2]
    hint_ref: (N, nodes*F)  f32    h_in tiled along lanes (residual branch)
    pgcn_ref: (nodes*F, nodes*F) bf16  block-diag(W_gcn_i)
    pgin_ref: (nodes*F, nodes*F) bf16  block-diag(W_gin_i)
    vec_ref : (12, nodes*F) f32    rows: g_gcn,b_gcn,g_gin,b_gin,g_skip,b_skip,
                                         g_res,b_res,w_gcn,w_gin,w_skip,w_res
    out_ref : (N, nodes*F)  f32    lane-stacked [out_0|out_1|out_2]
    """
    hstk = hstk_ref[...]                               # (N, 3F) f32
    hstk_bf = hstk.astype(jnp.bfloat16)

    # Graph aggregation for all nodes at once: (N,N)@(N,3F) -> (N,3F), f32 acc.
    agg = jnp.dot(adj_ref[...], hstk_bf, preferred_element_type=jnp.float32)

    # Per-node projections via block-diagonal placement (node chunks stay
    # lane-aligned, no cross-lane shuffles needed downstream).
    gcn_pre = jnp.dot(agg.astype(jnp.bfloat16), pgcn_ref[...],
                      preferred_element_type=jnp.float32)          # (N, 3F)
    gin_pre = jnp.dot((agg + hstk).astype(jnp.bfloat16), pgin_ref[...],
                      preferred_element_type=jnp.float32)          # (N, 3F)

    def bn(x):
        # Training-mode BatchNorm1d statistics over the graph-node axis (f32).
        m = jnp.mean(x, axis=0, keepdims=True)
        c = x - m
        v = jnp.mean(c * c, axis=0, keepdims=True)
        return c * lax.rsqrt(v + BN_EPS)                            # EUP rsqrt

    vec = vec_ref[...]                                              # (12, 3F)

    def affine_relu_weight(xn, gi, bi, wi):
        # Per-node affine + ReLU, then post-ReLU arch-weight multiply
        # (sign-safe for arbitrary NAS weights; no selector matmul).
        y = xn * vec[gi:gi + 1, :] + vec[bi:bi + 1, :]
        return jnp.maximum(y, 0.0) * vec[wi:wi + 1, :]

    out = (affine_relu_weight(bn(gcn_pre), 0, 1, 8)      # gcn
           + affine_relu_weight(bn(gin_pre), 2, 3, 9)    # gin
           + affine_relu_weight(bn(hstk), 4, 5, 10)      # skip
           + affine_relu_weight(bn(hint_ref[...]), 6, 7, 11))  # residual (hoisted)

    out_ref[...] = out.astype(out_ref.dtype)


def _block_diag(mats):
    f = mats[0].shape[0]
    n = len(mats)
    out = jnp.zeros((n * f, n * f), jnp.float32)
    for i, m in enumerate(mats):
        out = out.at[i * f:(i + 1) * f, i * f:(i + 1) * f].set(m)
    return out


def cell_middle_forward(adj, states, h_in, weights, node_params):
    """Pallas equivalent of Cell_Middle.forward.

    adj: (N, N) normalized adjacency; states: list (len nodes) of (N, F);
    h_in: (N, F); weights: (nodes, NUM_OPS).  Returns list (len nodes) of (N, F).
    """
    nodes = len(states)
    n, f = states[0].shape
    c = nodes * f

    # Lane-stacked states and lane-tiled residual input (host-side, cheap).
    hstk = jnp.concatenate([s.astype(jnp.float32) for s in states], axis=1)   # (N, 3F)
    hin_t = jnp.tile(h_in.astype(jnp.float32), (1, nodes))                    # (N, 3F)

    # Block-diagonal per-node projection weights (bf16 MXU operands).
    pgcn = _block_diag([p["w_gcn"] for p in node_params]).astype(jnp.bfloat16)
    pgin = _block_diag([p["w_gin"] for p in node_params]).astype(jnp.bfloat16)

    # One packed (12, 3F) tensor: BN affine params + arch weights, lane-stacked
    # across nodes in the same order as hstk.  Single DMA.
    gam = [jnp.concatenate([p["gamma"][j] for p in node_params]) for j in range(NUM_OPS)]
    bet = [jnp.concatenate([p["beta"][j] for p in node_params]) for j in range(NUM_OPS)]
    wl = [jnp.repeat(weights[:, j], f) for j in range(NUM_OPS)]
    vec = jnp.stack([gam[0], bet[0], gam[1], bet[1], gam[2], bet[2],
                     gam[3], bet[3], wl[0], wl[1], wl[2], wl[3]]).astype(jnp.float32)

    const2 = lambda i: (0, 0)
    out = pl.pallas_call(
        _cell_middle_kernel,
        out_shape=jax.ShapeDtypeStruct((n, c), jnp.float32),
        grid_spec=pltpu.PrefetchScalarGridSpec(
            num_scalar_prefetch=0,
            grid=(1,),                                   # single step: no grid overhead
            in_specs=[
                pl.BlockSpec((n, n), const2),            # adj (bf16)
                pl.BlockSpec((n, c), const2),            # lane-stacked states (f32)
                pl.BlockSpec((n, c), const2),            # tiled h_in (f32)
                pl.BlockSpec((c, c), const2),            # block-diag W_gcn (bf16)
                pl.BlockSpec((c, c), const2),            # block-diag W_gin (bf16)
                pl.BlockSpec((12, c), const2),           # packed gamma/beta/weights
            ],
            out_specs=pl.BlockSpec((n, c), const2),
        ),
        compiler_params=pltpu.CompilerParams(
            dimension_semantics=("arbitrary",)),
    )(adj.astype(jnp.bfloat16), hstk, hin_t, pgcn, pgin, vec)

    # Split the lane-stacked slab back into the per-node list (outside kernel).
    return [out[:, i * f:(i + 1) * f] for i in range(nodes)]


def _reference_mixed_op(weights, adj, h, h_in, params):
    agg = adj @ h
    cands = [agg @ params["w_gcn"], (agg + h) @ params["w_gin"], h, h_in]
    out = 0.0
    for j, x in enumerate(cands):
        mean = x.mean(axis=0, keepdims=True)
        var = ((x - mean) ** 2).mean(axis=0, keepdims=True)
        xn = (x - mean) / jnp.sqrt(var + BN_EPS)
        y = xn * params["gamma"][j][None, :] + params["beta"][j][None, :]
        out = out + weights[j] * jnp.maximum(y, 0.0)
    return out


def _init_node_params(key, feature_dim):
    k1, k2, k3, k4 = jax.random.split(key, 4)
    scale = 1.0 / jnp.sqrt(feature_dim)
    return {
        "w_gcn": jax.random.normal(k1, (feature_dim, feature_dim), jnp.float32) * scale,
        "w_gin": jax.random.normal(k2, (feature_dim, feature_dim), jnp.float32) * scale,
        "gamma": 1.0 + 0.1 * jax.random.normal(k3, (NUM_OPS, feature_dim), jnp.float32),
        "beta": 0.1 * jax.random.normal(k4, (NUM_OPS, feature_dim), jnp.float32),
    }


if __name__ == "__main__":
    key = jax.random.PRNGKey(0)
    nodes = 3          # cell nodes (Cell_Middle._nodes)
    n_graph = 16       # graph nodes
    feature_dim = 32

    k_adj, k_states, k_hin, k_w, k_params = jax.random.split(key, 5)

    # Dense symmetric normalized adjacency with self loops (the "g" argument).
    a = (jax.random.uniform(k_adj, (n_graph, n_graph)) < 0.3).astype(jnp.float32)
    a = jnp.maximum(a, a.T)
    a = a + jnp.eye(n_graph, dtype=jnp.float32)
    deg = a.sum(axis=1)
    d_inv_sqrt = 1.0 / jnp.sqrt(deg)
    adj = a * d_inv_sqrt[:, None] * d_inv_sqrt[None, :]

    states = [
        jax.random.normal(k, (n_graph, feature_dim), jnp.float32)
        for k in jax.random.split(k_states, nodes)
    ]
    h_in = jax.random.normal(k_hin, (n_graph, feature_dim), jnp.float32)

    # Architecture weights: (nodes, NUM_OPS), softmax-normalized per node.
    logits = jax.random.normal(k_w, (nodes, NUM_OPS), jnp.float32)
    weights = jax.nn.softmax(logits, axis=-1)

    node_params = [
        _init_node_params(k, feature_dim) for k in jax.random.split(k_params, nodes)
    ]

    outputs = cell_middle_forward(adj, states, h_in, weights, node_params)
    outputs = [jax.block_until_ready(o) for o in outputs]

    # Sanity-check against a pure-JAX f32 reference (bf16 MXU operands in the
    # kernel -> slightly wider tolerance than an all-f32 comparison).
    for i in range(nodes):
        ref = _reference_mixed_op(weights[i], adj, states[i], h_in, node_params[i])
        assert outputs[i].shape == (n_graph, feature_dim)
        if not jnp.allclose(outputs[i], ref, rtol=2e-2, atol=2e-2):
            raise AssertionError(f"mismatch on cell node {i}")

    print("KERNEL_OK")
</pallas_src>

<mosaic_0001>
module attributes {stable_mosaic.version = 11 : i64} {
  func.func @_cell_middle_kernel(%arg0: i32, %arg1: memref<16x16xbf16, #tpu.memory_space<vmem>>, %arg2: memref<16x96xf32, #tpu.memory_space<vmem>>, %arg3: memref<16x96xf32, #tpu.memory_space<vmem>>, %arg4: memref<96x96xbf16, #tpu.memory_space<vmem>>, %arg5: memref<96x96xbf16, #tpu.memory_space<vmem>>, %arg6: memref<12x96xf32, #tpu.memory_space<vmem>>, %arg7: memref<16x96xf32, #tpu.memory_space<vmem>>) attributes {dimension_semantics = [#tpu.dimension_semantics<arbitrary>], iteration_bounds = array<i64: 1>, scalar_prefetch = 0 : i64, scratch_operands = 0 : i64, tpu.core_type = #tpu.core_type<tc>, window_params = [{pipeline_mode = #tpu.pipeline_mode<synchronous>, transform_indices = @transform_0, window_bounds = array<i64: 16, 16>}, {pipeline_mode = #tpu.pipeline_mode<synchronous>, transform_indices = @transform_1, window_bounds = array<i64: 16, 96>}, {pipeline_mode = #tpu.pipeline_mode<synchronous>, transform_indices = @transform_2, window_bounds = array<i64: 16, 96>}, {pipeline_mode = #tpu.pipeline_mode<synchronous>, transform_indices = @transform_3, window_bounds = array<i64: 96, 96>}, {pipeline_mode = #tpu.pipeline_mode<synchronous>, transform_indices = @transform_4, window_bounds = array<i64: 96, 96>}, {pipeline_mode = #tpu.pipeline_mode<synchronous>, transform_indices = @transform_5, window_bounds = array<i64: 12, 96>}, {pipeline_mode = #tpu.pipeline_mode<synchronous>, transform_indices = @transform_6, window_bounds = array<i64: 16, 96>}]} {
    %c0 = arith.constant 0 : index
    %c0_0 = arith.constant 0 : index
    %0 = vector.load %arg2[%c0, %c0_0] : memref<16x96xf32, #tpu.memory_space<vmem>>, vector<16x96xf32>
    %1 = arith.truncf %0 : vector<16x96xf32> to vector<16x96xbf16>
    %c0_1 = arith.constant 0 : index
    %c0_2 = arith.constant 0 : index
    %2 = vector.load %arg1[%c0_1, %c0_2] : memref<16x16xbf16, #tpu.memory_space<vmem>>, vector<16x16xbf16>
    %cst = arith.constant dense<0.000000e+00> : vector<16x96xf32>
    %3 = tpu.matmul %2, %1, %cst {dimension_numbers = #tpu.dot_dimension_numbers<[1], [0], [0], [1], [0, 0, 1, 1], [], []>} : vector<16x16xbf16>, vector<16x96xbf16>, vector<16x96xf32> -> vector<16x96xf32>
    %4 = arith.truncf %3 : vector<16x96xf32> to vector<16x96xbf16>
    %c0_3 = arith.constant 0 : index
    %c0_4 = arith.constant 0 : index
    %5 = vector.load %arg4[%c0_3, %c0_4] : memref<96x96xbf16, #tpu.memory_space<vmem>>, vector<96x96xbf16>
    %cst_5 = arith.constant dense<0.000000e+00> : vector<16x96xf32>
    %6 = tpu.matmul %4, %5, %cst_5 {dimension_numbers = #tpu.dot_dimension_numbers<[1], [0], [0], [1], [0, 0, 1, 1], [], []>} : vector<16x96xbf16>, vector<96x96xbf16>, vector<16x96xf32> -> vector<16x96xf32>
    %7 = arith.addf %3, %0 : vector<16x96xf32>
    %8 = arith.truncf %7 : vector<16x96xf32> to vector<16x96xbf16>
    %c0_6 = arith.constant 0 : index
    %c0_7 = arith.constant 0 : index
    %9 = vector.load %arg5[%c0_6, %c0_7] : memref<96x96xbf16, #tpu.memory_space<vmem>>, vector<96x96xbf16>
    %cst_8 = arith.constant dense<0.000000e+00> : vector<16x96xf32>
    %10 = tpu.matmul %8, %9, %cst_8 {dimension_numbers = #tpu.dot_dimension_numbers<[1], [0], [0], [1], [0, 0, 1, 1], [], []>} : vector<16x96xbf16>, vector<96x96xbf16>, vector<16x96xf32> -> vector<16x96xf32>
    %c0_9 = arith.constant 0 : index
    %c0_10 = arith.constant 0 : index
    %11 = vector.load %arg6[%c0_9, %c0_10] : memref<12x96xf32, #tpu.memory_space<vmem>>, vector<12x96xf32>
    %cst_11 = arith.constant dense<0.000000e+00> : vector<96xf32>
    %12 = vector.multi_reduction <add>, %6, %cst_11 [0] : vector<16x96xf32> to vector<96xf32>
    %13 = vector.shape_cast %12 : vector<96xf32> to vector<1x96xf32>
    %cst_12 = arith.constant 1.600000e+01 : f32
    %14 = vector.broadcast %cst_12 : f32 to vector<1x96xf32>
    %15 = arith.divf %13, %14 : vector<1x96xf32>
    %16 = vector.broadcast %15 : vector<1x96xf32> to vector<16x96xf32>
    %17 = arith.subf %6, %16 : vector<16x96xf32>
    %18 = arith.mulf %17, %17 : vector<16x96xf32>
    %cst_13 = arith.constant dense<0.000000e+00> : vector<96xf32>
    %19 = vector.multi_reduction <add>, %18, %cst_13 [0] : vector<16x96xf32> to vector<96xf32>
    %20 = vector.shape_cast %19 : vector<96xf32> to vector<1x96xf32>
    %cst_14 = arith.constant 1.600000e+01 : f32
    %21 = vector.broadcast %cst_14 : f32 to vector<1x96xf32>
    %22 = arith.divf %20, %21 : vector<1x96xf32>
    %cst_15 = arith.constant 9.99999974E-6 : f32
    %23 = vector.broadcast %cst_15 : f32 to vector<1x96xf32>
    %24 = arith.addf %22, %23 : vector<1x96xf32>
    %25 = math.rsqrt %24 : vector<1x96xf32>
    %26 = vector.broadcast %25 : vector<1x96xf32> to vector<16x96xf32>
    %27 = arith.mulf %17, %26 : vector<16x96xf32>
    %28 = vector.extract_strided_slice %11 {offsets = [0, 0], sizes = [1, 96], strides = [1, 1]} : vector<12x96xf32> to vector<1x96xf32>
    %29 = vector.broadcast %28 : vector<1x96xf32> to vector<16x96xf32>
    %30 = arith.mulf %27, %29 : vector<16x96xf32>
    %31 = vector.extract_strided_slice %11 {offsets = [1, 0], sizes = [1, 96], strides = [1, 1]} : vector<12x96xf32> to vector<1x96xf32>
    %32 = vector.broadcast %31 : vector<1x96xf32> to vector<16x96xf32>
    %33 = arith.addf %30, %32 : vector<16x96xf32>
    %cst_16 = arith.constant 0.000000e+00 : f32
    %34 = vector.broadcast %cst_16 : f32 to vector<16x96xf32>
    %35 = arith.maximumf %33, %34 : vector<16x96xf32>
    %36 = vector.extract_strided_slice %11 {offsets = [8, 0], sizes = [1, 96], strides = [1, 1]} : vector<12x96xf32> to vector<1x96xf32>
    %37 = vector.broadcast %36 : vector<1x96xf32> to vector<16x96xf32>
    %38 = arith.mulf %35, %37 : vector<16x96xf32>
    %cst_17 = arith.constant dense<0.000000e+00> : vector<96xf32>
    %39 = vector.multi_reduction <add>, %10, %cst_17 [0] : vector<16x96xf32> to vector<96xf32>
    %40 = vector.shape_cast %39 : vector<96xf32> to vector<1x96xf32>
    %cst_18 = arith.constant 1.600000e+01 : f32
    %41 = vector.broadcast %cst_18 : f32 to vector<1x96xf32>
    %42 = arith.divf %40, %41 : vector<1x96xf32>
    %43 = vector.broadcast %42 : vector<1x96xf32> to vector<16x96xf32>
    %44 = arith.subf %10, %43 : vector<16x96xf32>
    %45 = arith.mulf %44, %44 : vector<16x96xf32>
    %cst_19 = arith.constant dense<0.000000e+00> : vector<96xf32>
    %46 = vector.multi_reduction <add>, %45, %cst_19 [0] : vector<16x96xf32> to vector<96xf32>
    %47 = vector.shape_cast %46 : vector<96xf32> to vector<1x96xf32>
    %cst_20 = arith.constant 1.600000e+01 : f32
    %48 = vector.broadcast %cst_20 : f32 to vector<1x96xf32>
    %49 = arith.divf %47, %48 : vector<1x96xf32>
    %cst_21 = arith.constant 9.99999974E-6 : f32
    %50 = vector.broadcast %cst_21 : f32 to vector<1x96xf32>
    %51 = arith.addf %49, %50 : vector<1x96xf32>
    %52 = math.rsqrt %51 : vector<1x96xf32>
    %53 = vector.broadcast %52 : vector<1x96xf32> to vector<16x96xf32>
    %54 = arith.mulf %44, %53 : vector<16x96xf32>
    %55 = vector.extract_strided_slice %11 {offsets = [2, 0], sizes = [1, 96], strides = [1, 1]} : vector<12x96xf32> to vector<1x96xf32>
    %56 = vector.broadcast %55 : vector<1x96xf32> to vector<16x96xf32>
    %57 = arith.mulf %54, %56 : vector<16x96xf32>
    %58 = vector.extract_strided_slice %11 {offsets = [3, 0], sizes = [1, 96], strides = [1, 1]} : vector<12x96xf32> to vector<1x96xf32>
    %59 = vector.broadcast %58 : vector<1x96xf32> to vector<16x96xf32>
    %60 = arith.addf %57, %59 : vector<16x96xf32>
    %cst_22 = arith.constant 0.000000e+00 : f32
    %61 = vector.broadcast %cst_22 : f32 to vector<16x96xf32>
    %62 = arith.maximumf %60, %61 : vector<16x96xf32>
    %63 = vector.extract_strided_slice %11 {offsets = [9, 0], sizes = [1, 96], strides = [1, 1]} : vector<12x96xf32> to vector<1x96xf32>
    %64 = vector.broadcast %63 : vector<1x96xf32> to vector<16x96xf32>
    %65 = arith.mulf %62, %64 : vector<16x96xf32>
    %66 = arith.addf %38, %65 : vector<16x96xf32>
    %cst_23 = arith.constant dense<0.000000e+00> : vector<96xf32>
    %67 = vector.multi_reduction <add>, %0, %cst_23 [0] : vector<16x96xf32> to vector<96xf32>
    %68 = vector.shape_cast %67 : vector<96xf32> to vector<1x96xf32>
    %cst_24 = arith.constant 1.600000e+01 : f32
    %69 = vector.broadcast %cst_24 : f32 to vector<1x96xf32>
    %70 = arith.divf %68, %69 : vector<1x96xf32>
    %71 = vector.broadcast %70 : vector<1x96xf32> to vector<16x96xf32>
    %72 = arith.subf %0, %71 : vector<16x96xf32>
    %73 = arith.mulf %72, %72 : vector<16x96xf32>
    %cst_25 = arith.constant dense<0.000000e+00> : vector<96xf32>
    %74 = vector.multi_reduction <add>, %73, %cst_25 [0] : vector<16x96xf32> to vector<96xf32>
    %75 = vector.shape_cast %74 : vector<96xf32> to vector<1x96xf32>
    %cst_26 = arith.constant 1.600000e+01 : f32
    %76 = vector.broadcast %cst_26 : f32 to vector<1x96xf32>
    %77 = arith.divf %75, %76 : vector<1x96xf32>
    %cst_27 = arith.constant 9.99999974E-6 : f32
    %78 = vector.broadcast %cst_27 : f32 to vector<1x96xf32>
    %79 = arith.addf %77, %78 : vector<1x96xf32>
    %80 = math.rsqrt %79 : vector<1x96xf32>
    %81 = vector.broadcast %80 : vector<1x96xf32> to vector<16x96xf32>
    %82 = arith.mulf %72, %81 : vector<16x96xf32>
    %83 = vector.extract_strided_slice %11 {offsets = [4, 0], sizes = [1, 96], strides = [1, 1]} : vector<12x96xf32> to vector<1x96xf32>
    %84 = vector.broadcast %83 : vector<1x96xf32> to vector<16x96xf32>
    %85 = arith.mulf %82, %84 : vector<16x96xf32>
    %86 = vector.extract_strided_slice %11 {offsets = [5, 0], sizes = [1, 96], strides = [1, 1]} : vector<12x96xf32> to vector<1x96xf32>
    %87 = vector.broadcast %86 : vector<1x96xf32> to vector<16x96xf32>
    %88 = arith.addf %85, %87 : vector<16x96xf32>
    %cst_28 = arith.constant 0.000000e+00 : f32
    %89 = vector.broadcast %cst_28 : f32 to vector<16x96xf32>
    %90 = arith.maximumf %88, %89 : vector<16x96xf32>
    %91 = vector.extract_strided_slice %11 {offsets = [10, 0], sizes = [1, 96], strides = [1, 1]} : vector<12x96xf32> to vector<1x96xf32>
    %92 = vector.broadcast %91 : vector<1x96xf32> to vector<16x96xf32>
    %93 = arith.mulf %90, %92 : vector<16x96xf32>
    %94 = arith.addf %66, %93 : vector<16x96xf32>
    %c0_29 = arith.constant 0 : index
    %c0_30 = arith.constant 0 : index
    %95 = vector.load %arg3[%c0_29, %c0_30] : memref<16x96xf32, #tpu.memory_space<vmem>>, vector<16x96xf32>
    %cst_31 = arith.constant dense<0.000000e+00> : vector<96xf32>
    %96 = vector.multi_reduction <add>, %95, %cst_31 [0] : vector<16x96xf32> to vector<96xf32>
    %97 = vector.shape_cast %96 : vector<96xf32> to vector<1x96xf32>
    %cst_32 = arith.constant 1.600000e+01 : f32
    %98 = vector.broadcast %cst_32 : f32 to vector<1x96xf32>
    %99 = arith.divf %97, %98 : vector<1x96xf32>
    %100 = vector.broadcast %99 : vector<1x96xf32> to vector<16x96xf32>
    %101 = arith.subf %95, %100 : vector<16x96xf32>
    %102 = arith.mulf %101, %101 : vector<16x96xf32>
    %cst_33 = arith.constant dense<0.000000e+00> : vector<96xf32>
    %103 = vector.multi_reduction <add>, %102, %cst_33 [0] : vector<16x96xf32> to vector<96xf32>
    %104 = vector.shape_cast %103 : vector<96xf32> to vector<1x96xf32>
    %cst_34 = arith.constant 1.600000e+01 : f32
    %105 = vector.broadcast %cst_34 : f32 to vector<1x96xf32>
    %106 = arith.divf %104, %105 : vector<1x96xf32>
    %cst_35 = arith.constant 9.99999974E-6 : f32
    %107 = vector.broadcast %cst_35 : f32 to vector<1x96xf32>
    %108 = arith.addf %106, %107 : vector<1x96xf32>
    %109 = math.rsqrt %108 : vector<1x96xf32>
    %110 = vector.broadcast %109 : vector<1x96xf32> to vector<16x96xf32>
    %111 = arith.mulf %101, %110 : vector<16x96xf32>
    %112 = vector.extract_strided_slice %11 {offsets = [6, 0], sizes = [1, 96], strides = [1, 1]} : vector<12x96xf32> to vector<1x96xf32>
    %113 = vector.broadcast %112 : vector<1x96xf32> to vector<16x96xf32>
    %114 = arith.mulf %111, %113 : vector<16x96xf32>
    %115 = vector.extract_strided_slice %11 {offsets = [7, 0], sizes = [1, 96], strides = [1, 1]} : vector<12x96xf32> to vector<1x96xf32>
    %116 = vector.broadcast %115 : vector<1x96xf32> to vector<16x96xf32>
    %117 = arith.addf %114, %116 : vector<16x96xf32>
    %cst_36 = arith.constant 0.000000e+00 : f32
    %118 = vector.broadcast %cst_36 : f32 to vector<16x96xf32>
    %119 = arith.maximumf %117, %118 : vector<16x96xf32>
    %120 = vector.extract_strided_slice %11 {offsets = [11, 0], sizes = [1, 96], strides = [1, 1]} : vector<12x96xf32> to vector<1x96xf32>
    %121 = vector.broadcast %120 : vector<1x96xf32> to vector<16x96xf32>
    %122 = arith.mulf %119, %121 : vector<16x96xf32>
    %123 = arith.addf %94, %122 : vector<16x96xf32>
    %c0_37 = arith.constant 0 : index
    %c0_38 = arith.constant 0 : index
    %124 = vector.load %arg7[%c0_37, %c0_38] : memref<16x96xf32, #tpu.memory_space<vmem>>, vector<16x96xf32>
    tpu.vector_store %arg7[%c0_37, %c0_38], %123 {strides = array<i32>} : memref<16x96xf32, #tpu.memory_space<vmem>>, vector<16x96xf32>,
    return
  }
  func.func @transform_0(%arg0: i32) -> (i32, i32) {
    %c0_i32 = arith.constant 0 : i32
    %c0_i32_0 = arith.constant 0 : i32
    %c0_i32_1 = arith.constant 0 : i32
    return %c0_i32, %c0_i32_0 : i32, i32
  }
  func.func @transform_1(%arg0: i32) -> (i32, i32) {
    %c0_i32 = arith.constant 0 : i32
    %c0_i32_0 = arith.constant 0 : i32
    %c0_i32_1 = arith.constant 0 : i32
    return %c0_i32, %c0_i32_0 : i32, i32
  }
  func.func @transform_2(%arg0: i32) -> (i32, i32) {
    %c0_i32 = arith.constant 0 : i32
    %c0_i32_0 = arith.constant 0 : i32
    %c0_i32_1 = arith.constant 0 : i32
    return %c0_i32, %c0_i32_0 : i32, i32
  }
  func.func @transform_3(%arg0: i32) -> (i32, i32) {
    %c0_i32 = arith.constant 0 : i32
    %c0_i32_0 = arith.constant 0 : i32
    %c0_i32_1 = arith.constant 0 : i32
    return %c0_i32, %c0_i32_0 : i32, i32
  }
  func.func @transform_4(%arg0: i32) -> (i32, i32) {
    %c0_i32 = arith.constant 0 : i32
    %c0_i32_0 = arith.constant 0 : i32
    %c0_i32_1 = arith.constant 0 : i32
    return %c0_i32, %c0_i32_0 : i32, i32
  }
  func.func @transform_5(%arg0: i32) -> (i32, i32) {
    %c0_i32 = arith.constant 0 : i32
    %c0_i32_0 = arith.constant 0 : i32
    %c0_i32_1 = arith.constant 0 : i32
    return %c0_i32, %c0_i32_0 : i32, i32
  }
  func.func @transform_6(%arg0: i32) -> (i32, i32) {
    %c0_i32 = arith.constant 0 : i32
    %c0_i32_0 = arith.constant 0 : i32
    %c0_i32_1 = arith.constant 0 : i32
    return %c0_i32, %c0_i32_0 : i32, i32
  }
}

</mosaic_0001>

<llo_original>
// kernel: tpu_custom_call.1
$region0: #{tpu_custom_call.1}
  #allocation0 [shape = 'u32[]', space=smem, size = 0x4, offset = 0x4, fixed_abs, tag = 'smem constant byte address 0x4 - core index']
  #allocation1 [shape = 'u32[144,128]{1,0:T(1,128)}', space=vmem, size = 0x12000, scoped, tag = 'internal scratch']
  %s0 = inlined_call_operand.hbm [shape: bf16[16,16], index: 0, kind: input, shape index: {}]
  %s1 = inlined_call_operand.hbm [shape: f32[16,96], index: 1, kind: input, shape index: {}]
  %s2 = inlined_call_operand.hbm [shape: f32[16,96], index: 2, kind: input, shape index: {}]
  %s3 = inlined_call_operand.hbm [shape: bf16[96,96], index: 3, kind: input, shape index: {}]
  %s4 = inlined_call_operand.hbm [shape: bf16[96,96], index: 4, kind: input, shape index: {}]
  %s5 = inlined_call_operand.hbm [shape: f32[12,96], index: 5, kind: input, shape index: {}]
  %s6 = inlined_call_operand.hbm [shape: f32[16,96], index: 6, kind: output, shape index: {}]
  %s7 = sld [smem:[#allocation0]]
  $region58: #{tpu_custom_call.1} parent=0
    _
  %s9 = ssub.s32 1, %s7
  %s10 = scalar_select 0, %s9, %s7
  $region1: #{tpu_custom_call.1} parent=0
    #allocation2 [shape = 'u8[4096]{0}', space=vmem, size = 0x1000, scoped, tag = 'input window, operand 0, single buffered']
    #allocation3 [shape = 's32[1]{0}', space=sflag, size = 0x4, scoped, tag = 'scoped memory for tpu_custom_call.1']
    #allocation4 [shape = 's32[1]{0}', space=sflag, size = 0x4, scoped, tag = 'scoped memory for tpu_custom_call.1']
    #allocation5 [shape = 'u8[8192]{0}', space=vmem, size = 0x2000, scoped, tag = 'input window, operand 1, single buffered']
    #allocation6 [shape = 's32[1]{0}', space=sflag, size = 0x4, scoped, tag = 'scoped memory for tpu_custom_call.1']
    #allocation7 [shape = 'u8[8192]{0}', space=vmem, size = 0x2000, scoped, tag = 'input window, operand 2, single buffered']
    #allocation8 [shape = 'u8[24576]{0}', space=vmem, size = 0x6000, scoped, tag = 'input window, operand 3, single buffered']
    #allocation9 [shape = 's32[1]{0}', space=sflag, size = 0x4, scoped, tag = 'scoped memory for tpu_custom_call.1']
    #allocation10 [shape = 'u8[24576]{0}', space=vmem, size = 0x6000, scoped, tag = 'input window, operand 4, single buffered']
    #allocation11 [shape = 'u8[8192]{0}', space=vmem, size = 0x2000, scoped, tag = 'input window, operand 5, single buffered']
    #allocation12 [shape = 's32[1]{0}', space=sflag, size = 0x4, scoped, tag = 'scoped memory for tpu_custom_call.1']
    #allocation13 [shape = 'u8[8192]{0}', space=vmem, size = 0x2000, scoped, tag = 'output window, operand 0, single buffered']
    %11 = vsyncpa [#allocation3], 0
    %12 = vsyncpa [#allocation6], 0
    %13 = vsyncpa [#allocation9], 0
    %14 = vsyncpa [#allocation12], 0
    %15 = vsyncpa [#allocation4], 0
    // Predicated region
    $region2: #{tpu_custom_call.1} parent=1 // pred_check
      _
    $region3: #{tpu_custom_call.1} parent=1 // pred_check_branch
      %17 = sbr.rel (0) target = $region5
    $region4: #{tpu_custom_call.1} parent=1 // pred_region
      %s19 = ssub.s32 128, 128
      %20 = vsyncadd [#allocation3], %s19
      %s21 = sshll.u32 [#allocation2], 4
      %s22 = int_to_ptr.vmem [resolvable:$true] %s21
      %27 = dma.hbm_to_vmem [thread:$0]  %s0, 128, %s22, [#allocation3], 64, 64, 4
    $region5: #{tpu_custom_call.1} parent=1 // pred_fallthru
      _
    // Predicated region
    $region6: #{tpu_custom_call.1} parent=1 // pred_check
      _
    $region7: #{tpu_custom_call.1} parent=1 // pred_check_branch
      %29 = sbr.rel (0) target = $region9
    $region8: #{tpu_custom_call.1} parent=1 // pred_region
      %s31 = ssub.s32 256, 256
      %32 = vsyncadd [#allocation6], %s31
      %s33 = sshll.u32 [#allocation5], 4
      %s34 = int_to_ptr.vmem [resolvable:$true] %s33
      %39 = dma.hbm_to_vmem [thread:$0]  %s1, 256, %s34, [#allocation6], 128, 128, 8
    $region9: #{tpu_custom_call.1} parent=1 // pred_fallthru
      _
    // Predicated region
    $region10: #{tpu_custom_call.1} parent=1 // pred_check
      _
    $region11: #{tpu_custom_call.1} parent=1 // pred_check_branch
      %41 = sbr.rel (0) target = $region13
    $region12: #{tpu_custom_call.1} parent=1 // pred_region
      %s43 = ssub.s32 256, 256
      %44 = vsyncadd [#allocation6], %s43
      %s45 = sshll.u32 [#allocation7], 4
      %s46 = int_to_ptr.vmem [resolvable:$true] %s45
      %51 = dma.hbm_to_vmem [thread:$0]  %s2, 256, %s46, [#allocation6], 128, 128, 8
    $region13: #{tpu_custom_call.1} parent=1 // pred_fallthru
      _
    // Predicated region
    $region14: #{tpu_custom_call.1} parent=1 // pred_check
      _
    $region15: #{tpu_custom_call.1} parent=1 // pred_check_branch
      %53 = sbr.rel (0) target = $region17
    $region16: #{tpu_custom_call.1} parent=1 // pred_region
      %s55 = ssub.s32 768, 768
      %56 = vsyncadd [#allocation9], %s55
      %s57 = sshll.u32 [#allocation8], 4
      %s58 = int_to_ptr.vmem [resolvable:$true] %s57
      %63 = dma.hbm_to_vmem [thread:$0]  %s3, 768, %s58, [#allocation9], 64, 64, 4
    $region17: #{tpu_custom_call.1} parent=1 // pred_fallthru
      _
    // Predicated region
    $region18: #{tpu_custom_call.1} parent=1 // pred_check
      _
    $region19: #{tpu_custom_call.1} parent=1 // pred_check_branch
      %65 = sbr.rel (0) target = $region21
    $region20: #{tpu_custom_call.1} parent=1 // pred_region
      %s67 = ssub.s32 768, 768
      %68 = vsyncadd [#allocation9], %s67
      %s69 = sshll.u32 [#allocation10], 4
      %s70 = int_to_ptr.vmem [resolvable:$true] %s69
      %75 = dma.hbm_to_vmem [thread:$0]  %s4, 768, %s70, [#allocation9], 64, 64, 4
    $region21: #{tpu_custom_call.1} parent=1 // pred_fallthru
      _
    // Predicated region
    $region22: #{tpu_custom_call.1} parent=1 // pred_check
      _
    $region23: #{tpu_custom_call.1} parent=1 // pred_check_branch
      %77 = sbr.rel (0) target = $region25
    $region24: #{tpu_custom_call.1} parent=1 // pred_region
      %s79 = ssub.s32 256, 256
      %80 = vsyncadd [#allocation12], %s79
      %s81 = sshll.u32 [#allocation11], 4
      %s82 = int_to_ptr.vmem [resolvable:$true] %s81
      %87 = dma.hbm_to_vmem [thread:$0]  %s5, 256, %s82, [#allocation12], 128, 128, 8
    $region25: #{tpu_custom_call.1} parent=1 // pred_fallthru
      _
    // Predicated region
    $region26: #{tpu_custom_call.1} parent=1 // pred_check
      _
    $region27: #{tpu_custom_call.1} parent=1 // pred_check_branch
      %89 = sbr.rel (0) target = $region29
    $region28: #{tpu_custom_call.1} parent=1 // pred_region
      %90 = dma.done [#allocation3], 128
    $region29: #{tpu_custom_call.1} parent=1 // pred_fallthru
      _
    // Predicated region
    $region30: #{tpu_custom_call.1} parent=1 // pred_check
      _
    $region31: #{tpu_custom_call.1} parent=1 // pred_check_branch
      %92 = sbr.rel (0) target = $region33
    $region32: #{tpu_custom_call.1} parent=1 // pred_region
      %93 = dma.done [#allocation6], 256
    $region33: #{tpu_custom_call.1} parent=1 // pred_fallthru
      _
    // Predicated region
    $region34: #{tpu_custom_call.1} parent=1 // pred_check
      _
    $region35: #{tpu_custom_call.1} parent=1 // pred_check_branch
      %95 = sbr.rel (0) target = $region37
    $region36: #{tpu_custom_call.1} parent=1 // pred_region
      %96 = dma.done [#allocation6], 256
    $region37: #{tpu_custom_call.1} parent=1 // pred_fallthru
      _
    // Predicated region
    $region38: #{tpu_custom_call.1} parent=1 // pred_check
      _
    $region39: #{tpu_custom_call.1} parent=1 // pred_check_branch
      %98 = sbr.rel (0) target = $region41
    $region40: #{tpu_custom_call.1} parent=1 // pred_region
      %99 = dma.done [#allocation9], 768
    $region41: #{tpu_custom_call.1} parent=1 // pred_fallthru
      _
    // Predicated region
    $region42: #{tpu_custom_call.1} parent=1 // pred_check
      _
    $region43: #{tpu_custom_call.1} parent=1 // pred_check_branch
      %101 = sbr.rel (0) target = $region45
    $region44: #{tpu_custom_call.1} parent=1 // pred_region
      %102 = dma.done [#allocation9], 768
    $region45: #{tpu_custom_call.1} parent=1 // pred_fallthru
      _
    // Predicated region
    $region46: #{tpu_custom_call.1} parent=1 // pred_check
      _
    $region47: #{tpu_custom_call.1} parent=1 // pred_check_branch
      %104 = sbr.rel (0) target = $region49
    $region48: #{tpu_custom_call.1} parent=1 // pred_region
      %105 = dma.done [#allocation12], 256
    $region49: #{tpu_custom_call.1} parent=1 // pred_fallthru
      _
    %v107 = vld [vmem:[#allocation5] sm:$0xff]
    %v108 = vld [vmem:[#allocation5 + $0x8] sm:$0xff]
    %v109 = vpack.c.bf16 %v108, %v107
    %v110 = vld [vmem:[#allocation2] sm:$0xf]
    %v111 = vld [vmem:[#allocation2 + $0x4] sm:$0xf]
    %v114 = vunpack.c.l.b16 %v110
    %v115 = vunpack.c.l.b16 %v111
    %v116 = vpack.c.b16 %v115, %v114
    %vm117 = vcmask 130048
    %v119 = vsel %vm117, %v116, 0
    %121 = vmatprep.subr.bf16.mxu0 0
    %122 = vmatpush1.bf16.msra.mxu0 0
    %123 = vmatprep.subr.bf16.mxu0 0
    %124 = vmatpush1.bf16.msra.mxu0 0
    %125 = vmatprep.subr.bf16.mxu0 0
    %126 = vmatpush1.bf16.msra.mxu0 0
    %127 = vmatprep.subr.bf16.mxu0 0
    %128 = vmatpush1.bf16.msra.mxu0 0
    %129 = vmatprep.subr.bf16.mxu0 0
    %130 = vmatpush1.bf16.msra.mxu0 0
    %131 = vmatprep.subr.bf16.mxu0 0
    %132 = vmatpush1.bf16.msra.mxu0 0
    %133 = vmatprep.subr.bf16.mxu0 0
    %134 = vmatpush1.bf16.msra.mxu0 0
    %135 = vmatprep.subr.bf16.mxu0 0
    %136 = vmatpush1.bf16.msra.mxu0 %v109
    %137 = vmatprep.subr.bf16.mxu0 0
    %138 = vmatpush2.bf16.msra.mxu0 0
    %139 = vmatprep.subr.bf16.mxu0 0
    %140 = vmatpush2.bf16.msra.mxu0 0
    %141 = vmatprep.subr.bf16.mxu0 0
    %142 = vmatpush2.bf16.msra.mxu0 0
    %143 = vmatprep.subr.bf16.mxu0 0
    %144 = vmatpush2.bf16.msra.mxu0 0
    %145 = vmatprep.subr.bf16.mxu0 0
    %146 = vmatpush2.bf16.msra.mxu0 0
    %147 = vmatprep.subr.bf16.mxu0 0
    %148 = vmatpush2.bf16.msra.mxu0 0
    %149 = vmatprep.subr.bf16.mxu0 0
    %150 = vmatpush2.bf16.msra.mxu0 0
    %151 = vmatprep.subr.bf16.mxu0 0
    %152 = vmatpush2.bf16.msra.mxu0 0
    %153 = vmatprep.mubr.bf16.mxu0 0
    %154 = vmatmul.mubr.bf16.gmra.mxu0 %v119
    %v155 = vpop.f32.mrf.mxu0
    %v156 = vadd.f32 0.0, %v155
    %v157 = vpop.f32.mrf.mxu0
    %v158 = vpop.f32.mrf.mxu0
    %v159 = vadd.f32 0.0, %v158
    %v160 = vpop.f32.mrf.mxu0
    %161 = vdwg.mxu0
    %v162 = vpack.c.bf16 %v159, %v156
    %v163 = vld [vmem:[#allocation8] sm:$0xf]
    %v164 = vld [vmem:[#allocation8 + $0x4] sm:$0xf]
    %v165 = vld [vmem:[#allocation8 + $0x8] sm:$0xf]
    %v166 = vld [vmem:[#allocation8 + $0xc] sm:$0xf]
    %v167 = vld [vmem:[#allocation8 + $0x10] sm:$0xf]
    %v168 = vld [vmem:[#allocation8 + $0x14] sm:$0xf]
    %v169 = vld [vmem:[#allocation8 + $0x18] sm:$0xf]
    %v170 = vld [vmem:[#allocation8 + $0x1c] sm:$0xf]
    %v171 = vld [vmem:[#allocation8 + $0x20] sm:$0xf]
    %v172 = vld [vmem:[#allocation8 + $0x24] sm:$0xf]
    %v173 = vld [vmem:[#allocation8 + $0x28] sm:$0xf]
    %v174 = vld [vmem:[#allocation8 + $0x2c] sm:$0xf]
    %v187 = vunpack.c.l.b16 %v163
    %v188 = vunpack.c.l.b16 %v164
    %v189 = vunpack.c.l.b16 %v165
    %v190 = vunpack.c.l.b16 %v166
    %v191 = vunpack.c.l.b16 %v167
    %v192 = vunpack.c.l.b16 %v168
    %v193 = vunpack.c.l.b16 %v169
    %v194 = vunpack.c.l.b16 %v170
    %v195 = vunpack.c.l.b16 %v171
    %v196 = vunpack.c.l.b16 %v172
    %v197 = vunpack.c.l.b16 %v173
    %v198 = vunpack.c.l.b16 %v174
    %v199 = vpack.c.b16 %v188, %v187
    %v200 = vpack.c.b16 %v190, %v189
    %v201 = vpack.c.b16 %v192, %v191
    %v202 = vpack.c.b16 %v194, %v193
    %v203 = vpack.c.b16 %v196, %v195
    %v204 = vpack.c.b16 %v198, %v197
    %vm211 = vcmask 785408
    %v213 = vsel %vm211, %v162, 0
    %215 = vmatprep.subr.bf16.mxu0 0
    %216 = vmatpush1.bf16.msra.mxu0 0
    %217 = vmatprep.subr.bf16.mxu0 0
    %218 = vmatpush1.bf16.msra.mxu0 0
    %219 = vmatprep.subr.bf16.mxu0 0
    %220 = vmatpush1.bf16.msra.mxu0 %v204
    %221 = vmatprep.subr.bf16.mxu0 0
    %222 = vmatpush1.bf16.msra.mxu0 %v203
    %223 = vmatprep.subr.bf16.mxu0 0
    %224 = vmatpush1.bf16.msra.mxu0 %v202
    %225 = vmatprep.subr.bf16.mxu0 0
    %226 = vmatpush1.bf16.msra.mxu0 %v201
    %227 = vmatprep.subr.bf16.mxu0 0
    %228 = vmatpush1.bf16.msra.mxu0 %v200
    %229 = vmatprep.subr.bf16.mxu0 0
    %230 = vmatpush1.bf16.msra.mxu0 %v199
    %231 = vmatprep.subr.bf16.mxu0 0
    %232 = vmatpush2.bf16.msra.mxu0 0
    %233 = vmatprep.subr.bf16.mxu0 0
    %234 = vmatpush2.bf16.msra.mxu0 0
    %235 = vmatprep.subr.bf16.mxu0 0
    %236 = vmatpush2.bf16.msra.mxu0 0
    %237 = vmatprep.subr.bf16.mxu0 0
    %238 = vmatpush2.bf16.msra.mxu0 0
    %239 = vmatprep.subr.bf16.mxu0 0
    %240 = vmatpush2.bf16.msra.mxu0 0
    %241 = vmatprep.subr.bf16.mxu0 0
    %242 = vmatpush2.bf16.msra.mxu0 0
    %243 = vmatprep.subr.bf16.mxu0 0
    %244 = vmatpush2.bf16.msra.mxu0 0
    %245 = vmatprep.subr.bf16.mxu0 0
    %246 = vmatpush2.bf16.msra.mxu0 0
    %247 = vmatprep.mubr.bf16.mxu0 0
    %248 = vmatmul.mubr.bf16.gmra.mxu0 %v213
    %v249 = vpop.f32.mrf.mxu0
    %v250 = vadd.f32 0.0, %v249
    %v251 = vpop.f32.mrf.mxu0
    %v252 = vpop.f32.mrf.mxu0
    %v253 = vadd.f32 0.0, %v252
    %v254 = vpop.f32.mrf.mxu0
    %255 = vdwg.mxu0
    %v256 = vadd.f32 %v156, %v107
    %v257 = vadd.f32 %v159, %v108
    %v258 = vpack.c.bf16 %v257, %v256
    %v259 = vld [vmem:[#allocation10] sm:$0xf]
    %v260 = vld [vmem:[#allocation10 + $0x4] sm:$0xf]
    %v261 = vld [vmem:[#allocation10 + $0x8] sm:$0xf]
    %v262 = vld [vmem:[#allocation10 + $0xc] sm:$0xf]
    %v263 = vld [vmem:[#allocation10 + $0x10] sm:$0xf]
    %v264 = vld [vmem:[#allocation10 + $0x14] sm:$0xf]
    %v265 = vld [vmem:[#allocation10 + $0x18] sm:$0xf]
    %v266 = vld [vmem:[#allocation10 + $0x1c] sm:$0xf]
    %v267 = vld [vmem:[#allocation10 + $0x20] sm:$0xf]
    %v268 = vld [vmem:[#allocation10 + $0x24] sm:$0xf]
    %v269 = vld [vmem:[#allocation10 + $0x28] sm:$0xf]
    %v270 = vld [vmem:[#allocation10 + $0x2c] sm:$0xf]
    %v283 = vunpack.c.l.b16 %v259
    %v284 = vunpack.c.l.b16 %v260
    %v285 = vunpack.c.l.b16 %v261
    %v286 = vunpack.c.l.b16 %v262
    %v287 = vunpack.c.l.b16 %v263
    %v288 = vunpack.c.l.b16 %v264
    %v289 = vunpack.c.l.b16 %v265
    %v290 = vunpack.c.l.b16 %v266
    %v291 = vunpack.c.l.b16 %v267
    %v292 = vunpack.c.l.b16 %v268
    %v293 = vunpack.c.l.b16 %v269
    %v294 = vunpack.c.l.b16 %v270
    %v295 = vpack.c.b16 %v284, %v283
    %v296 = vpack.c.b16 %v286, %v285
    %v297 = vpack.c.b16 %v288, %v287
    %v298 = vpack.c.b16 %v290, %v289
    %v299 = vpack.c.b16 %v292, %v291
    %v300 = vpack.c.b16 %v294, %v293
    %v308 = vsel %vm211, %v258, 0
    %310 = vmatprep.subr.bf16.mxu0 0
    %311 = vmatpush1.bf16.msra.mxu0 0
    %312 = vmatprep.subr.bf16.mxu0 0
    %313 = vmatpush1.bf16.msra.mxu0 0
    %314 = vmatprep.subr.bf16.mxu0 0
    %315 = vmatpush1.bf16.msra.mxu0 %v300
    %316 = vmatprep.subr.bf16.mxu0 0
    %317 = vmatpush1.bf16.msra.mxu0 %v299
    %318 = vmatprep.subr.bf16.mxu0 0
    %319 = vmatpush1.bf16.msra.mxu0 %v298
    %320 = vmatprep.subr.bf16.mxu0 0
    %321 = vmatpush1.bf16.msra.mxu0 %v297
    %322 = vmatprep.subr.bf16.mxu0 0
    %323 = vmatpush1.bf16.msra.mxu0 %v296
    %324 = vmatprep.subr.bf16.mxu0 0
    %325 = vmatpush1.bf16.msra.mxu0 %v295
    %326 = vmatprep.subr.bf16.mxu0 0
    %327 = vmatpush2.bf16.msra.mxu0 0
    %328 = vmatprep.subr.bf16.mxu0 0
    %329 = vmatpush2.bf16.msra.mxu0 0
    %330 = vmatprep.subr.bf16.mxu0 0
    %331 = vmatpush2.bf16.msra.mxu0 0
    %332 = vmatprep.subr.bf16.mxu0 0
    %333 = vmatpush2.bf16.msra.mxu0 0
    %334 = vmatprep.subr.bf16.mxu0 0
    %335 = vmatpush2.bf16.msra.mxu0 0
    %336 = vmatprep.subr.bf16.mxu0 0
    %337 = vmatpush2.bf16.msra.mxu0 0
    %338 = vmatprep.subr.bf16.mxu0 0
    %339 = vmatpush2.bf16.msra.mxu0 0
    %340 = vmatprep.subr.bf16.mxu0 0
    %341 = vmatpush2.bf16.msra.mxu0 0
    %342 = vmatprep.mubr.bf16.mxu0 0
    %343 = vmatmul.mubr.bf16.gmra.mxu0 %v308
    %v344 = vpop.f32.mrf.mxu0
    %v345 = vadd.f32 0.0, %v344
    %v346 = vpop.f32.mrf.mxu0
    %v347 = vpop.f32.mrf.mxu0
    %v348 = vadd.f32 0.0, %v347
    %v349 = vpop.f32.mrf.mxu0
    %350 = vdwg.mxu0
    %v351 = vld [vmem:[#allocation11] sm:$0xff]
    %v352 = vld [vmem:[#allocation11 + $0x8] sm:$0xf]
    %v353 = vsel %vm211, %v250, 0.0
    %v354 = vsel %vm211, %v253, 0.0
    %v355 = vadd.f32 %v353, %v354
    %v356 = vrot.slane %v355, 4
    %v357 = vadd.f32 %v355, %v356
    %v358 = vrot.slane %v357, 2
    %v359 = vadd.f32 %v357, %v358
    %v360 = vrot.slane %v359, 1
    %v361 = vadd.f32 %v359, %v360
    %v362 = vrcp.pop 16.0
    %v363 = vmul.f32 %v361, %v362
    %v364 = vsub.f32 %v250, %v363
    %v365 = vsub.f32 %v253, %v363
    %v366 = vmul.f32 %v364, %v364
    %v367 = vmul.f32 %v365, %v365
    %v368 = vsel %vm211, %v366, 0.0
    %v369 = vsel %vm211, %v367, 0.0
    %v370 = vadd.f32 %v368, %v369
    %v371 = vrot.slane %v370, 4
    %v372 = vadd.f32 %v370, %v371
    %v373 = vrot.slane %v372, 2
    %v374 = vadd.f32 %v372, %v373
    %v375 = vrot.slane %v374, 1
    %v376 = vadd.f32 %v374, %v375
    %v377 = vmul.f32 %v376, %v362
    %v378 = vadd.f32 %v377, 1e-05
    %v379 = vrsqrt.pop %v378
    %v380 = vmul.f32 %v364, %v379
    %v381 = vmul.f32 %v365, %v379
    %v382 = vlaneseq
    %v383 = vshrl.u32 %v382, 7
    %v384 = vsub.s32 0, %v383
    %v385 = vrot.slane %v351, %v384
    %v386 = vmul.f32 %v380, %v385
    %v387 = vmul.f32 %v381, %v385
    %v388 = vlaneseq
    %v389 = vshrl.u32 %v388, 7
    %v390 = vsub.s32 1, %v389
    %v391 = vrot.slane %v351, %v390
    %v392 = vadd.f32 %v386, %v391
    %v393 = vadd.f32 %v387, %v391
    %v394 = vmax.f32 %v392, 0.0
    %v395 = vmax.f32 %v393, 0.0
    %v396 = vlaneseq
    %v397 = vshrl.u32 %v396, 7
    %v398 = vsub.s32 0, %v397
    %v399 = vrot.slane %v352, %v398
    %v400 = vmul.f32 %v394, %v399
    %v401 = vmul.f32 %v395, %v399
    %v402 = vsel %vm211, %v345, 0.0
    %v403 = vsel %vm211, %v348, 0.0
    %v404 = vadd.f32 %v402, %v403
    %v405 = vrot.slane %v404, 4
    %v406 = vadd.f32 %v404, %v405
    %v407 = vrot.slane %v406, 2
    %v408 = vadd.f32 %v406, %v407
    %v409 = vrot.slane %v408, 1
    %v410 = vadd.f32 %v408, %v409
    %v411 = vmul.f32 %v410, %v362
    %v412 = vsub.f32 %v345, %v411
    %v413 = vsub.f32 %v348, %v411
    %v414 = vmul.f32 %v412, %v412
    %v415 = vmul.f32 %v413, %v413
    %v416 = vsel %vm211, %v414, 0.0
    %v417 = vsel %vm211, %v415, 0.0
    %v418 = vadd.f32 %v416, %v417
    %v419 = vrot.slane %v418, 4
    %v420 = vadd.f32 %v418, %v419
    %v421 = vrot.slane %v420, 2
    %v422 = vadd.f32 %v420, %v421
    %v423 = vrot.slane %v422, 1
    %v424 = vadd.f32 %v422, %v423
    %v425 = vmul.f32 %v424, %v362
    %v426 = vadd.f32 %v425, 1e-05
    %v427 = vrsqrt.pop %v426
    %v428 = vmul.f32 %v412, %v427
    %v429 = vmul.f32 %v413, %v427
    %v430 = vlaneseq
    %v431 = vshrl.u32 %v430, 7
    %v432 = vsub.s32 2, %v431
    %v433 = vrot.slane %v351, %v432
    %v434 = vmul.f32 %v428, %v433
    %v435 = vmul.f32 %v429, %v433
    %v436 = vlaneseq
    %v437 = vshrl.u32 %v436, 7
    %v438 = vsub.s32 3, %v437
    %v439 = vrot.slane %v351, %v438
    %v440 = vadd.f32 %v434, %v439
    %v441 = vadd.f32 %v435, %v439
    %v442 = vmax.f32 %v440, 0.0
    %v443 = vmax.f32 %v441, 0.0
    %v444 = vlaneseq
    %v445 = vshrl.u32 %v444, 7
    %v446 = vsub.s32 1, %v445
    %v447 = vrot.slane %v352, %v446
    %v448 = vmul.f32 %v442, %v447
    %v449 = vmul.f32 %v443, %v447
    %v450 = vadd.f32 %v400, %v448
    %v451 = vadd.f32 %v401, %v449
    %v452 = vsel %vm211, %v107, 0.0
    %v453 = vsel %vm211, %v108, 0.0
    %v454 = vadd.f32 %v452, %v453
    %v455 = vrot.slane %v454, 4
    %v456 = vadd.f32 %v454, %v455
    %v457 = vrot.slane %v456, 2
    %v458 = vadd.f32 %v456, %v457
    %v459 = vrot.slane %v458, 1
    %v460 = vadd.f32 %v458, %v459
    %v461 = vmul.f32 %v460, %v362
    %v462 = vsub.f32 %v107, %v461
    %v463 = vsub.f32 %v108, %v461
    %v464 = vmul.f32 %v462, %v462
    %v465 = vmul.f32 %v463, %v463
    %v466 = vsel %vm211, %v464, 0.0
    %v467 = vsel %vm211, %v465, 0.0
    %v468 = vadd.f32 %v466, %v467
    %v469 = vrot.slane %v468, 4
    %v470 = vadd.f32 %v468, %v469
    %v471 = vrot.slane %v470, 2
    %v472 = vadd.f32 %v470, %v471
    %v473 = vrot.slane %v472, 1
    %v474 = vadd.f32 %v472, %v473
    %v475 = vmul.f32 %v474, %v362
    %v476 = vadd.f32 %v475, 1e-05
    %v477 = vrsqrt.pop %v476
    %v478 = vmul.f32 %v462, %v477
    %v479 = vmul.f32 %v463, %v477
    %v480 = vlaneseq
    %v481 = vshrl.u32 %v480, 7
    %v482 = vsub.s32 4, %v481
    %v483 = vrot.slane %v351, %v482
    %v484 = vmul.f32 %v478, %v483
    %v485 = vmul.f32 %v479, %v483
    %v486 = vlaneseq
    %v487 = vshrl.u32 %v486, 7
    %v488 = vsub.s32 5, %v487
    %v489 = vrot.slane %v351, %v488
    %v490 = vadd.f32 %v484, %v489
    %v491 = vadd.f32 %v485, %v489
    %v492 = vmax.f32 %v490, 0.0
    %v493 = vmax.f32 %v491, 0.0
    %v494 = vlaneseq
    %v495 = vshrl.u32 %v494, 7
    %v496 = vsub.s32 2, %v495
    %v497 = vrot.slane %v352, %v496
    %v498 = vmul.f32 %v492, %v497
    %v499 = vmul.f32 %v493, %v497
    %v500 = vadd.f32 %v450, %v498
    %v501 = vadd.f32 %v451, %v499
    %v502 = vld [vmem:[#allocation7] sm:$0xff]
    %v503 = vld [vmem:[#allocation7 + $0x8] sm:$0xff]
    %v504 = vsel %vm211, %v502, 0.0
    %v505 = vsel %vm211, %v503, 0.0
    %v506 = vadd.f32 %v504, %v505
    %v507 = vrot.slane %v506, 4
    %v508 = vadd.f32 %v506, %v507
    %v509 = vrot.slane %v508, 2
    %v510 = vadd.f32 %v508, %v509
    %v511 = vrot.slane %v510, 1
    %v512 = vadd.f32 %v510, %v511
    %v513 = vmul.f32 %v512, %v362
    %v514 = vsub.f32 %v502, %v513
    %v515 = vsub.f32 %v503, %v513
    %v516 = vmul.f32 %v514, %v514
    %v517 = vmul.f32 %v515, %v515
    %v518 = vsel %vm211, %v516, 0.0
    %v519 = vsel %vm211, %v517, 0.0
    %v520 = vadd.f32 %v518, %v519
    %v521 = vrot.slane %v520, 4
    %v522 = vadd.f32 %v520, %v521
    %v523 = vrot.slane %v522, 2
    %v524 = vadd.f32 %v522, %v523
    %v525 = vrot.slane %v524, 1
    %v526 = vadd.f32 %v524, %v525
    %v527 = vmul.f32 %v526, %v362
    %v528 = vadd.f32 %v527, 1e-05
    %v529 = vrsqrt.pop %v528
    %v530 = vmul.f32 %v514, %v529
    %v531 = vmul.f32 %v515, %v529
    %v532 = vlaneseq
    %v533 = vshrl.u32 %v532, 7
    %v534 = vsub.s32 6, %v533
    %v535 = vrot.slane %v351, %v534
    %v536 = vmul.f32 %v530, %v535
    %v537 = vmul.f32 %v531, %v535
    %v538 = vlaneseq
    %v539 = vshrl.u32 %v538, 7
    %v540 = vsub.s32 7, %v539
    %v541 = vrot.slane %v351, %v540
    %v542 = vadd.f32 %v536, %v541
    %v543 = vadd.f32 %v537, %v541
    %v544 = vmax.f32 %v542, 0.0
    %v545 = vmax.f32 %v543, 0.0
    %v546 = vlaneseq
    %v547 = vshrl.u32 %v546, 7
    %v548 = vsub.s32 3, %v547
    %v549 = vrot.slane %v352, %v548
    %v550 = vmul.f32 %v544, %v549
    %v551 = vmul.f32 %v545, %v549
    %v552 = vadd.f32 %v500, %v550
    %v553 = vadd.f32 %v501, %v551
    %554 = vst.msk [vmem:[#allocation13] sm:$0xff] %vm211, %v552
    %555 = vst.msk [vmem:[#allocation13 + $0x8] sm:$0xff] %vm211, %v553
    // Predicated region
    $region50: #{tpu_custom_call.1} parent=1 // pred_check
      _
    $region51: #{tpu_custom_call.1} parent=1 // pred_check_branch
      %557 = sbr.rel (0) target = $region53
    $region52: #{tpu_custom_call.1} parent=1 // pred_region
      %s559 = ssub.s32 256, 256
      %560 = vsyncadd [#allocation4], %s559
      %s561 = sshll.u32 [#allocation13], 4
      %s562 = int_to_ptr.vmem [resolvable:$true] %s561
      %567 = dma.vmem_to_hbm [thread:$0]  %s562, 256, %s6, [#allocation4], 128, 128, 8
    $region53: #{tpu_custom_call.1} parent=1 // pred_fallthru
      _
    // Predicated region
    $region54: #{tpu_custom_call.1} parent=1 // pred_check
      _
    $region55: #{tpu_custom_call.1} parent=1 // pred_check_branch
      %569 = sbr.rel (0) target = $region57
    $region56: #{tpu_custom_call.1} parent=1 // pred_region
      %570 = dma.done [#allocation4], 256
    $region57: #{tpu_custom_call.1} parent=1 // pred_fallthru
      _
    %571 = vsyncpa [#allocation3], 1
    %572 = vsyncpa [#allocation6], 1
    %573 = vsyncpa [#allocation9], 1
    %574 = vsyncpa [#allocation12], 1
    %575 = vsyncpa [#allocation4], 1

</llo_original>
